<compile_context>
chip_gen: v7x
topology: tpu7x:2x2x1
jax: 0.10.0
libtpu: 0.0.40
codegen_flags: <defaults>
</compile_context>

<pallas_src>
import functools

import jax
import jax.numpy as jnp
from jax.experimental import pallas as pl
from jax.experimental.pallas import tpu as pltpu

_LANE = 128                       # vreg lane width
_SUB = 8                          # vreg sublane count
_MAX_TILE_ROWS = 8192             # 8192 x 128 x 4 B = 4 MiB per f32/i32 block
_VMEM_BUDGET = 24 * 1024 * 1024   # budget for 2 inputs x 2 pipeline buffers


def _round_up(n: int, m: int) -> int:
    return (n + m - 1) // m * m


def _accuracy_count_kernel(x_ref, y_ref, count_ref, *, tile_rows, tiles_per_split,
                           valid_rows, emit_edge_mask):
    """Accumulates exact int32 match counts into a resident (8,128) out block."""
    c = pl.program_id(0)          # TensorCore split (parallel axis)
    j = pl.program_id(1)          # row-tile within the split (arbitrary axis)

    @pl.when(j == 0)
    def _init():
        count_ref[...] = jnp.zeros_like(count_ref)

    # torch .long() semantics: truncation toward zero.  Skip the cast for refs
    # that are already int32 (keeps VALU slack; kernel stays DMA-bound).
    x = x_ref[...]
    y = y_ref[...]
    if x.dtype != jnp.int32:
        x = x.astype(jnp.int32)
    if y.dtype != jnp.int32:
        y = y.astype(jnp.int32)
    eq = x == y

    def _accumulate(e):
        # (tile_rows,128)->(G,8,128) is a free re-tiling (never crosses (8,128)
        # tile boundaries); per-step accumulation is VPU-only vreg adds.
        # TODO(synk): if the bundle dump ever shows this reshape materializing,
        # switch to an unrolled fori_loop over e[pl.ds(g*8, 8), :] slices.
        partial = e.reshape(tile_rows // _SUB, _SUB, _LANE).astype(jnp.int32).sum(axis=0)
        count_ref[...] += partial

    if not emit_edge_mask:
        # Common case: every tile is fully valid -> zero masking overhead.
        _accumulate(eq)
    else:
        t_global = c * tiles_per_split + j
        is_edge = (t_global + 1) * tile_rows > valid_rows

        @pl.when(jnp.logical_not(is_edge))
        def _full():
            _accumulate(eq)

        @pl.when(is_edge)
        def _edge():
            # Only the partial last tile (and any phantom tile of an uneven
            # core split) pays for the iota + mask.
            row = jax.lax.broadcasted_iota(jnp.int32, eq.shape, 0) + t_global * tile_rows
            _accumulate(jnp.where(row < valid_rows, eq, False))


def accuracy(input_arr: jax.Array, target_arr: jax.Array, *,
             min_pallas_numel: int = 0) -> jax.Array:
    """Pallas equivalent of Accuracy.forward. Returns a scalar float32."""
    assert input_arr.shape == target_arr.shape
    numel = int(input_arr.size)
    if numel == 0:
        return jnp.float32(jnp.nan)

    if numel < min_pallas_numel:
        # Tiny inputs: fixed pallas_call/DMA setup overhead dwarfs the work.
        return jnp.mean(
            (input_arr.astype(jnp.int32) == target_arr.astype(jnp.int32)).astype(jnp.float32)
        )

    x_flat = input_arr.reshape(-1)
    y_flat = target_arr.reshape(-1)

    # Sentinel padding (x -> 0, y -> 1 so padded positions never match).  Small
    # inputs are padded to a full (8,128) tile (cheap, <= 4 MiB arrays); large
    # inputs only to a multiple of 128 lanes.
    # TODO(synk): for very large unaligned inputs, handle the <128-element tail
    # in plain JAX to avoid this whole-array pad copy entirely.
    rows_exact = pl.cdiv(numel, _LANE)
    if rows_exact <= _MAX_TILE_ROWS:
        padded_numel = _round_up(numel, _SUB * _LANE)
    else:
        padded_numel = _round_up(numel, _LANE)
    if padded_numel != numel:
        pad = padded_numel - numel
        x_flat = jnp.pad(x_flat, (0, pad), constant_values=0)
        y_flat = jnp.pad(y_flat, (0, pad), constant_values=1)

    rows = padded_numel // _LANE

    # Big, VMEM-budgeted tiles: amortize the per-grid-step pipeline overhead
    # while staying under the 32 MiB scoped VMEM default on v5e/v6e/v7x.
    itemsize = max(x_flat.dtype.itemsize, y_flat.dtype.itemsize, 4)
    budget_rows = _VMEM_BUDGET // (2 * 2 * _LANE * itemsize)   # 2 inputs x 2 bufs
    max_tile_rows = max(_SUB, min(_MAX_TILE_ROWS, budget_rows // _SUB * _SUB))
    tile_rows = rows if rows <= max_tile_rows else max_tile_rows
    num_tiles = pl.cdiv(rows, tile_rows)

    # Split the row-tile range across TensorCores (~2x HBM bandwidth on v7x;
    # harmless serial split on single-core v5e/v6e).
    num_splits = 2 if num_tiles >= 2 else 1
    tiles_per_split = pl.cdiv(num_tiles, num_splits)

    # Masking is only emitted if a partial last tile or a phantom tile (uneven
    # core split) can exist; aligned inputs take a mask-free kernel.
    emit_edge_mask = (rows % tile_rows != 0) or (num_splits * tiles_per_split != num_tiles)

    x2 = x_flat.reshape(rows, _LANE)
    y2 = y_flat.reshape(rows, _LANE)

    def in_index_map(c, j):
        # Clamp so phantom tiles of an uneven split never DMA out of bounds
        # (their contribution is fully masked in-kernel).
        return (jnp.minimum(c * tiles_per_split + j, num_tiles - 1), 0)

    kernel = functools.partial(
        _accuracy_count_kernel,
        tile_rows=tile_rows,
        tiles_per_split=tiles_per_split,
        valid_rows=rows,
        emit_edge_mask=emit_edge_mask,
    )

    in_bytes = x2.size * x2.dtype.itemsize + y2.size * y2.dtype.itemsize
    counts = pl.pallas_call(
        kernel,
        out_shape=jax.ShapeDtypeStruct((num_splits * _SUB, _LANE), jnp.int32),
        grid_spec=pltpu.PrefetchScalarGridSpec(
            num_scalar_prefetch=0,
            grid=(num_splits, tiles_per_split),
            in_specs=[
                pl.BlockSpec((tile_rows, _LANE), in_index_map),
                pl.BlockSpec((tile_rows, _LANE), in_index_map),
            ],
            out_specs=pl.BlockSpec((_SUB, _LANE), lambda c, j: (c, 0)),
        ),
        compiler_params=pltpu.CompilerParams(
            dimension_semantics=("parallel", "arbitrary"),
            vmem_limit_bytes=32 * 1024 * 1024,    # safe on v5e/v6e/v7x
        ),
        cost_estimate=pl.CostEstimate(
            flops=numel, transcendentals=0, bytes_accessed=in_bytes
        ),
    )(x2, y2)

    # Exact int32 partial counts; the tiny cross-lane reduce + float32 divide
    # happen in XLA.  For numel >= 2^31 fall back to f32 summation (mirrors
    # torch's .float() rounding of the count).
    if numel < 2**31:
        count = jnp.sum(counts).astype(jnp.float32)
    else:
        count = jnp.sum(counts.astype(jnp.float32))
    return count / jnp.float32(numel)


def _ref_accuracy(pred, targ):
    return jnp.mean(
        (pred.astype(jnp.int32) == targ.astype(jnp.int32)).astype(jnp.float32)
    )


if __name__ == "__main__":
    key = jax.random.PRNGKey(0)
    k1, k2, k3, k4, k5, k6, k7 = jax.random.split(key, 7)

    # --- Test 1: small class-prediction style input [B, C, H, W] = [2, 4, 16, 16]
    shape1 = (2, 4, 16, 16)
    pred1 = jax.random.randint(k1, shape1, 0, 5).astype(jnp.float32)   # .long() path
    targ1 = jax.random.randint(k2, shape1, 0, 5).astype(jnp.int32)
    acc1 = jax.block_until_ready(accuracy(pred1, targ1))
    assert jnp.allclose(acc1, _ref_accuracy(pred1, targ1), atol=1e-6), acc1

    # --- Test 2: larger unaligned int8 input -> exercises multi-tile grid,
    #             2-way TensorCore split, 128-lane padding and the edge mask.
    shape2 = (9, 123457)
    pred2 = jax.random.randint(k3, shape2, 0, 5, dtype=jnp.int8)
    targ2 = jax.random.randint(k4, shape2, 0, 5, dtype=jnp.int8)
    acc2 = jax.block_until_ready(accuracy(pred2, targ2))
    assert jnp.allclose(acc2, _ref_accuracy(pred2, targ2), atol=1e-6), acc2

    # --- Test 3: tiny odd-shaped float input with fractional parts
    #             (truncation semantics) -> exercises sentinel padding to (8,128).
    shape3 = (5, 7, 11)
    pred3 = (jax.random.randint(k5, shape3, 0, 3).astype(jnp.float32)
             + jax.random.uniform(k6, shape3) * 0.9)
    targ3 = jax.random.randint(k7, shape3, 0, 3).astype(jnp.int32)
    acc3 = jax.block_until_ready(accuracy(pred3, targ3))
    assert jnp.allclose(acc3, _ref_accuracy(pred3, targ3), atol=1e-6), acc3

    print("KERNEL_OK")
</pallas_src>

<mosaic_0001>
module attributes {stable_mosaic.version = 11 : i64} {
  func.func @_accuracy_count_kernel(%arg0: i32, %arg1: i32, %arg2: memref<16x128xf32, #tpu.memory_space<vmem>>, %arg3: memref<16x128xi32, #tpu.memory_space<vmem>>, %arg4: memref<8x128xi32, #tpu.memory_space<vmem>>) attributes {dimension_semantics = [#tpu.dimension_semantics<parallel>, #tpu.dimension_semantics<arbitrary>], iteration_bounds = array<i64: 1, 1>, scalar_prefetch = 0 : i64, scratch_operands = 0 : i64, tpu.core_type = #tpu.core_type<tc>, window_params = [{transform_indices = @transform_0, window_bounds = array<i64: 16, 128>}, {transform_indices = @transform_1, window_bounds = array<i64: 16, 128>}, {transform_indices = @transform_2, window_bounds = array<i64: 8, 128>}]} {
    %c0_i32 = arith.constant 0 : i32
    %0 = arith.cmpi eq, %arg1, %c0_i32 : i32
    %1 = arith.extui %0 : i1 to i32
    %c0_i32_0 = arith.constant 0 : i32
    %2 = arith.cmpi ne, %1, %c0_i32_0 : i32
    scf.if %2 {
      %c0_i32_8 = arith.constant 0 : i32
      %13 = vector.broadcast %c0_i32_8 : i32 to vector<8x128xi32>
      %c0_9 = arith.constant 0 : index
      %c0_10 = arith.constant 0 : index
      %14 = vector.load %arg4[%c0_9, %c0_10] : memref<8x128xi32, #tpu.memory_space<vmem>>, vector<8x128xi32>
      tpu.vector_store %arg4[%c0_9, %c0_10], %13 {strides = array<i32>} : memref<8x128xi32, #tpu.memory_space<vmem>>, vector<8x128xi32>,
    } else {
    }
    %c0 = arith.constant 0 : index
    %c0_1 = arith.constant 0 : index
    %3 = vector.load %arg2[%c0, %c0_1] : memref<16x128xf32, #tpu.memory_space<vmem>>, vector<16x128xf32>
    %c0_2 = arith.constant 0 : index
    %c0_3 = arith.constant 0 : index
    %4 = vector.load %arg3[%c0_2, %c0_3] : memref<16x128xi32, #tpu.memory_space<vmem>>, vector<16x128xi32>
    %5 = arith.fptosi %3 : vector<16x128xf32> to vector<16x128xi32>
    %6 = arith.cmpi eq, %5, %4 : vector<16x128xi32>
    %7 = vector.shape_cast %6 : vector<16x128xi1> to vector<2x8x128xi1>
    %8 = arith.extui %7 : vector<2x8x128xi1> to vector<2x8x128xi32>
    %cst = arith.constant dense<0> : vector<8x128xi32>
    %9 = vector.multi_reduction <add>, %8, %cst [0] : vector<2x8x128xi32> to vector<8x128xi32>
    %c0_4 = arith.constant 0 : index
    %c0_5 = arith.constant 0 : index
    %10 = vector.load %arg4[%c0_4, %c0_5] : memref<8x128xi32, #tpu.memory_space<vmem>>, vector<8x128xi32>
    %11 = arith.addi %10, %9 : vector<8x128xi32>
    %c0_6 = arith.constant 0 : index
    %c0_7 = arith.constant 0 : index
    %12 = vector.load %arg4[%c0_6, %c0_7] : memref<8x128xi32, #tpu.memory_space<vmem>>, vector<8x128xi32>
    tpu.vector_store %arg4[%c0_6, %c0_7], %11 {strides = array<i32>} : memref<8x128xi32, #tpu.memory_space<vmem>>, vector<8x128xi32>,
    return
  }
  func.func @transform_0(%arg0: i32, %arg1: i32) -> (i32, i32) {
    %c1_i32 = arith.constant 1 : i32
    %0 = arith.muli %arg0, %c1_i32 : i32
    %1 = arith.addi %0, %arg1 : i32
    %c0_i32 = arith.constant 0 : i32
    %2 = arith.minsi %1, %c0_i32 : i32
    %c0_i32_0 = arith.constant 0 : i32
    %c0_i32_1 = arith.constant 0 : i32
    return %2, %c0_i32_0 : i32, i32
  }
  func.func @transform_1(%arg0: i32, %arg1: i32) -> (i32, i32) {
    %c1_i32 = arith.constant 1 : i32
    %0 = arith.muli %arg0, %c1_i32 : i32
    %1 = arith.addi %0, %arg1 : i32
    %c0_i32 = arith.constant 0 : i32
    %2 = arith.minsi %1, %c0_i32 : i32
    %c0_i32_0 = arith.constant 0 : i32
    %c0_i32_1 = arith.constant 0 : i32
    return %2, %c0_i32_0 : i32, i32
  }
  func.func @transform_2(%arg0: i32, %arg1: i32) -> (i32, i32) {
    %c0_i32 = arith.constant 0 : i32
    %c0_i32_0 = arith.constant 0 : i32
    return %arg0, %c0_i32 : i32, i32
  }
}

</mosaic_0001>

<llo_original>
// kernel: tpu_custom_call.1
$region0: #{tpu_custom_call.1}
  #allocation0 [shape = 'u32[]', space=smem, size = 0x4, offset = 0x4, fixed_abs, tag = 'smem constant byte address 0x4 - core index']
  #allocation1 [shape = 'u32[144,128]{1,0:T(1,128)}', space=vmem, size = 0x12000, scoped, tag = 'internal scratch']
  %s0 = inlined_call_operand.hbm [shape: f32[16,128], index: 0, kind: input, shape index: {}]
  %s1 = inlined_call_operand.hbm [shape: s32[16,128], index: 1, kind: input, shape index: {}]
  %s2 = inlined_call_operand.hbm [shape: s32[8,128], index: 2, kind: output, shape index: {}]
  %s3 = sld [smem:[#allocation0]]
  $region30: #{tpu_custom_call.1} parent=0
    _
  %s5 = ssub.s32 1, %s3
  %s6 = scalar_select 0, %s5, %s3
  $region1: #{tpu_custom_call.1} parent=0
    #allocation2 [shape = 'u8[8192]{0}', space=vmem, size = 0x2000, scoped, tag = 'input window, operand 0, single buffered']
    #allocation3 [shape = 's32[1]{0}', space=sflag, size = 0x4, scoped, tag = 'scoped memory for tpu_custom_call.1']
    #allocation4 [shape = 's32[1]{0}', space=sflag, size = 0x4, scoped, tag = 'scoped memory for tpu_custom_call.1']
    #allocation5 [shape = 'u8[8192]{0}', space=vmem, size = 0x2000, scoped, tag = 'input window, operand 1, single buffered']
    #allocation6 [shape = 's32[1]{0}', space=sflag, size = 0x4, scoped, tag = 'scoped memory for tpu_custom_call.1']
    #allocation7 [shape = 'u8[4096]{0}', space=vmem, size = 0x1000, scoped, tag = 'output window, operand 0, single buffered']
    %7 = vsyncpa [#allocation3], 0
    %8 = vsyncpa [#allocation6], 0
    %9 = vsyncpa [#allocation4], 0
    // Predicated region
    $region2: #{tpu_custom_call.1} parent=1 // pred_check
      _
    $region3: #{tpu_custom_call.1} parent=1 // pred_check_branch
      %11 = sbr.rel (0) target = $region5
    $region4: #{tpu_custom_call.1} parent=1 // pred_region
      %s12 = sadd.s32 0, 0
      %p13 = scmp.lt.s32.totalorder %s12, 0
      %s14 = scalar_select %p13, %s12, 0
      %s15 = smul.u32 2, %s14
      %s17 = ssub.s32 256, 256
      %18 = vsyncadd [#allocation3], %s17
      %s19 = smul.addr %s15, 128
      %s20 = scalar_lea.hbm %s0, %s19
      %s21 = sshll.u32 [#allocation2], 4
      %s22 = int_to_ptr.vmem [resolvable:$true] %s21
      %27 = dma.hbm_to_vmem [thread:$0]  %s20, 256, %s22, [#allocation3], 128, 128, 8
    $region5: #{tpu_custom_call.1} parent=1 // pred_fallthru
      _
    // Predicated region
    $region6: #{tpu_custom_call.1} parent=1 // pred_check
      _
    $region7: #{tpu_custom_call.1} parent=1 // pred_check_branch
      %29 = sbr.rel (0) target = $region9
    $region8: #{tpu_custom_call.1} parent=1 // pred_region
      %s30 = sadd.s32 0, 0
      %p31 = scmp.lt.s32.totalorder %s30, 0
      %s32 = scalar_select %p31, %s30, 0
      %s33 = smul.u32 2, %s32
      %s35 = ssub.s32 256, 256
      %36 = vsyncadd [#allocation6], %s35
      %s37 = smul.addr %s33, 128
      %s38 = scalar_lea.hbm %s1, %s37
      %s39 = sshll.u32 [#allocation5], 4
      %s40 = int_to_ptr.vmem [resolvable:$true] %s39
      %45 = dma.hbm_to_vmem [thread:$0]  %s38, 256, %s40, [#allocation6], 128, 128, 8
    $region9: #{tpu_custom_call.1} parent=1 // pred_fallthru
      _
    // Predicated region
    $region10: #{tpu_custom_call.1} parent=1 // pred_check
      _
    $region11: #{tpu_custom_call.1} parent=1 // pred_check_branch
      %47 = sbr.rel (0) target = $region13
    $region12: #{tpu_custom_call.1} parent=1 // pred_region
      %48 = dma.done [#allocation3], 256
    $region13: #{tpu_custom_call.1} parent=1 // pred_fallthru
      _
    // Predicated region
    $region14: #{tpu_custom_call.1} parent=1 // pred_check
      _
    $region15: #{tpu_custom_call.1} parent=1 // pred_check_branch
      %50 = sbr.rel (0) target = $region17
    $region16: #{tpu_custom_call.1} parent=1 // pred_region
      %51 = dma.done [#allocation6], 256
    $region17: #{tpu_custom_call.1} parent=1 // pred_fallthru
      _
    %s52 = sadd.s32 0, 0
    %p53 = scmp.lt.s32.totalorder %s52, 0
    %s54 = scalar_select %p53, %s52, 0
    %s55 = smul.u32 2, %s54
    %s56 = sadd.s32 0, 0
    %p57 = scmp.lt.s32.totalorder %s56, 0
    %s58 = scalar_select %p57, %s56, 0
    %s59 = smul.u32 2, %s58
    %p60 = scmp.eq.s32.totalorder 0, 0
    // Predicated region
    $region18: #{tpu_custom_call.1} parent=1 // pred_check
      %p61 = pneg %p60
    $region19: #{tpu_custom_call.1} parent=1 // pred_check_branch
      %63 = sbr.rel (%p61) target = $region21
    $region20: #{tpu_custom_call.1} parent=1 // pred_region
      %64 = vst [vmem:[#allocation7] sm:$0xff] 0
    $region21: #{tpu_custom_call.1} parent=1 // pred_fallthru
      _
    %v65 = vld [vmem:[#allocation2] sm:$0xff]
    %v66 = vld [vmem:[#allocation2 + $0x8] sm:$0xff]
    %v67 = vld [vmem:[#allocation5] sm:$0xff]
    %v68 = vld [vmem:[#allocation5 + $0x8] sm:$0xff]
    %v69 = vcvt.f32.s32.to.zero.pseudo %v65
    %v70 = vcvt.f32.s32.to.zero.pseudo %v66
    %vm71 = vcmp.eq.s32.totalorder %v69, %v67
    %vm72 = vcmp.eq.s32.totalorder %v70, %v68
    %v73 = vsel %vm71, 1, 0
    %v74 = vsel %vm72, 1, 0
    %v75 = vadd.s32 %v73, %v74
    %v76 = vld [vmem:[#allocation7] sm:$0xff]
    %v77 = vadd.s32 %v76, %v75
    %78 = vst [vmem:[#allocation7] sm:$0xff] %v77
    // Predicated region
    $region22: #{tpu_custom_call.1} parent=1 // pred_check
      _
    $region23: #{tpu_custom_call.1} parent=1 // pred_check_branch
      %80 = sbr.rel (0) target = $region25
    $region24: #{tpu_custom_call.1} parent=1 // pred_region
      %s82 = ssub.s32 128, 128
      %83 = vsyncadd [#allocation4], %s82
      %s85 = sshll.u32 [#allocation7], 4
      %s86 = int_to_ptr.vmem [resolvable:$true] %s85
      %88 = dma.vmem_to_hbm [thread:$0]  %s86, 128, %s2, [#allocation4]
    $region25: #{tpu_custom_call.1} parent=1 // pred_fallthru
      _
    // Predicated region
    $region26: #{tpu_custom_call.1} parent=1 // pred_check
      _
    $region27: #{tpu_custom_call.1} parent=1 // pred_check_branch
      %90 = sbr.rel (0) target = $region29
    $region28: #{tpu_custom_call.1} parent=1 // pred_region
      %91 = dma.done [#allocation4], 128
    $region29: #{tpu_custom_call.1} parent=1 // pred_fallthru
      _
    %92 = vsyncpa [#allocation3], 1
    %93 = vsyncpa [#allocation6], 1
    %94 = vsyncpa [#allocation4], 1

</llo_original>
